<compile_context>
chip_gen: v7x
topology: tpu7x:2x2x1
jax: 0.10.0
libtpu: 0.0.40
codegen_flags: <defaults>
</compile_context>

<pallas_src>
import jax
import jax.numpy as jnp
from jax.experimental import pallas as pl
from jax.experimental.pallas import tpu as pltpu

_EPS = 1e-5
_NEG_SLOPE = 0.2


def _transpose_conv_block_kernel(x_ref, w_ref, o_ref):
    # x_ref: (1, Cin, HW) bf16 ; w_ref: (4*Cout, Cin) bf16 ; o_ref: (1, 4*Cout, HW) f32
    hw = x_ref.shape[2]
    cout = o_ref.shape[1] // 4

    x = x_ref[0]                                   # (Cin, HW)  bf16
    wk = w_ref[...]                                # (4*Cout, Cin) bf16

    # ConvTranspose2d (k=2, s=2, no overlap): one bf16 MXU matmul, f32 accumulate.
    y = jnp.dot(wk, x, preferred_element_type=jnp.float32)      # (4*Cout, HW) f32

    # InstanceNorm2d stats in one pass: per-row sum and sum-of-squares,
    # then fold the 4 sub-pixel row groups (rows k*Cout + c) into per-channel stats.
    s1 = jnp.sum(y, axis=1, keepdims=True)                      # (4*Cout, 1)
    s2 = jnp.sum(y * y, axis=1, keepdims=True)                  # (4*Cout, 1)
    s1 = s1[0:cout] + s1[cout:2 * cout] + s1[2 * cout:3 * cout] + s1[3 * cout:4 * cout]
    s2 = s2[0:cout] + s2[cout:2 * cout] + s2[2 * cout:3 * cout] + s2[3 * cout:4 * cout]

    inv_count = 1.0 / (4.0 * hw)
    mean = s1 * inv_count                                       # (Cout, 1)
    var = jnp.maximum(s2 * inv_count - mean * mean, 0.0)        # biased variance, f32
    inv_std = jax.lax.rsqrt(var + _EPS)                         # EUP slot
    scale = inv_std                                             # (Cout, 1)
    shift = -mean * inv_std                                     # (Cout, 1)

    # Broadcast per-channel scalars back to the 4 sub-pixel row groups.
    scale4 = jnp.concatenate([scale, scale, scale, scale], axis=0)   # (4*Cout, 1)
    shift4 = jnp.concatenate([shift, shift, shift, shift], axis=0)   # (4*Cout, 1)

    yn = y * scale4 + shift4
    # LeakyReLU(0.2)
    yn = jnp.where(yn >= 0.0, yn, _NEG_SLOPE * yn)

    o_ref[0] = yn.astype(o_ref.dtype)


def transpose_conv_block(x, weight):
    """x: (N, Cin, H, W) f32; weight: (Cin, Cout, 2, 2) ConvTranspose2d weight."""
    n, cin, h, w = x.shape
    cout = weight.shape[1]
    hw = h * w

    # Lane-dense input, bf16 operands for the MXU (accumulation stays f32).
    x2 = x.reshape(n, cin, hw).astype(jnp.bfloat16)
    # (Cin, Cout, 2, 2) -> (di, dj, Cout, Cin) -> (4*Cout, Cin); row = (di*2+dj)*Cout + c
    w_k = jnp.transpose(weight, (2, 3, 1, 0)).reshape(4 * cout, cin).astype(jnp.bfloat16)

    x_blk_bytes = cin * hw * 2
    w_bytes = 4 * cout * cin * 2
    out_blk_bytes = 4 * cout * hw * 4
    vmem_limit = int(
        2 * (x_blk_bytes + w_bytes)     # double-buffered inputs
        + 2 * out_blk_bytes             # double-buffered output
        + 2 * out_blk_bytes             # f32 intermediates / relayout headroom
        + (2 << 20)
    )
    vmem_limit = min(max(vmem_limit, 32 * 1024 * 1024), 64 * 1024 * 1024)

    cost = pl.CostEstimate(
        flops=2 * n * hw * cin * 4 * cout + 10 * n * 4 * cout * hw,
        transcendentals=n * cout,
        bytes_accessed=n * x_blk_bytes + w_bytes + n * out_blk_bytes,
    )

    y = pl.pallas_call(
        _transpose_conv_block_kernel,
        out_shape=jax.ShapeDtypeStruct((n, 4 * cout, hw), x.dtype),
        grid_spec=pltpu.PrefetchScalarGridSpec(
            num_scalar_prefetch=0,
            grid=(n,),
            in_specs=[
                pl.BlockSpec((1, cin, hw), lambda i: (i, 0, 0)),
                pl.BlockSpec((4 * cout, cin), lambda i: (0, 0)),
            ],
            out_specs=pl.BlockSpec((1, 4 * cout, hw), lambda i: (i, 0, 0)),
        ),
        compiler_params=pltpu.CompilerParams(
            dimension_semantics=("parallel",),
            vmem_limit_bytes=vmem_limit,
        ),
        cost_estimate=cost,
    )(x2, w_k)

    # Sub-pixel interleave back to NCHW: rows are (di, dj, c), columns are (i, j).
    # TODO(synk): fuse this interleave into the kernel or keep the pre-interleave layout downstream.
    y = y.reshape(n, 2, 2, cout, h, w).transpose(0, 3, 4, 1, 5, 2)
    return y.reshape(n, cout, 2 * h, 2 * w)


def _reference(x, weight):
    """Pure-JAX reference matching the PyTorch module (conv operands in bf16 to match the kernel)."""
    n, cin, h, w = x.shape
    cout = weight.shape[1]
    xb = x.astype(jnp.bfloat16).astype(jnp.float32)
    wb = weight.astype(jnp.bfloat16).astype(jnp.float32)
    # out[n,o,2i+k,2j+l] = sum_c x[n,c,i,j] * W[c,o,k,l]
    y = jnp.einsum("ncij,cokl->noikjl", xb, wb,
                   precision=jax.lax.Precision.HIGHEST).reshape(n, cout, 2 * h, 2 * w)
    mean = jnp.mean(y, axis=(2, 3), keepdims=True)
    var = jnp.mean(jnp.square(y - mean), axis=(2, 3), keepdims=True)
    y = (y - mean) * jax.lax.rsqrt(var + _EPS)
    return jnp.where(y >= 0.0, y, _NEG_SLOPE * y)


if __name__ == "__main__":
    key = jax.random.PRNGKey(0)
    kx, kw = jax.random.split(key)

    N, Cin, Cout, H, W = 2, 8, 4, 16, 16
    x = jax.random.normal(kx, (N, Cin, H, W), dtype=jnp.float32)
    weight = jax.random.normal(kw, (Cin, Cout, 2, 2), dtype=jnp.float32) * 0.1

    out = jax.block_until_ready(transpose_conv_block(x, weight))
    ref = jax.block_until_ready(_reference(x, weight))

    assert out.shape == (N, Cout, 2 * H, 2 * W), out.shape
    max_err = float(jnp.max(jnp.abs(out - ref)))
    assert jnp.allclose(out, ref, rtol=1e-3, atol=1e-3), max_err
    print("KERNEL_OK")
</pallas_src>

<mosaic_0001>
module attributes {stable_mosaic.version = 11 : i64} {
  func.func @_transpose_conv_block_kernel(%arg0: i32, %arg1: memref<1x8x256xbf16, #tpu.memory_space<vmem>>, %arg2: memref<16x8xbf16, #tpu.memory_space<vmem>>, %arg3: memref<1x16x256xf32, #tpu.memory_space<vmem>>) attributes {dimension_semantics = [#tpu.dimension_semantics<parallel>], iteration_bounds = array<i64: 2>, scalar_prefetch = 0 : i64, scratch_operands = 0 : i64, tpu.core_type = #tpu.core_type<tc>, window_params = [{transform_indices = @transform_0, window_bounds = array<i64: 1, 8, 256>}, {pipeline_mode = #tpu.pipeline_mode<synchronous>, transform_indices = @transform_1, window_bounds = array<i64: 16, 8>}, {transform_indices = @transform_2, window_bounds = array<i64: 1, 16, 256>}]} {
    %c0 = arith.constant 0 : index
    %c0_0 = arith.constant 0 : index
    %c0_1 = arith.constant 0 : index
    %0 = vector.load %arg1[%c0, %c0_0, %c0_1] : memref<1x8x256xbf16, #tpu.memory_space<vmem>>, vector<1x8x256xbf16>
    %1 = vector.shape_cast %0 : vector<1x8x256xbf16> to vector<8x256xbf16>
    %c0_2 = arith.constant 0 : index
    %c0_3 = arith.constant 0 : index
    %2 = vector.load %arg2[%c0_2, %c0_3] : memref<16x8xbf16, #tpu.memory_space<vmem>>, vector<16x8xbf16>
    %cst = arith.constant dense<0.000000e+00> : vector<16x256xf32>
    %3 = tpu.matmul %2, %1, %cst {dimension_numbers = #tpu.dot_dimension_numbers<[1], [0], [0], [1], [0, 0, 1, 1], [], []>} : vector<16x8xbf16>, vector<8x256xbf16>, vector<16x256xf32> -> vector<16x256xf32>
    %cst_4 = arith.constant dense<0.000000e+00> : vector<16xf32>
    %4 = vector.multi_reduction <add>, %3, %cst_4 [1] : vector<16x256xf32> to vector<16xf32>
    %5 = vector.shape_cast %4 : vector<16xf32> to vector<16x1xf32>
    %6 = arith.mulf %3, %3 : vector<16x256xf32>
    %cst_5 = arith.constant dense<0.000000e+00> : vector<16xf32>
    %7 = vector.multi_reduction <add>, %6, %cst_5 [1] : vector<16x256xf32> to vector<16xf32>
    %8 = vector.shape_cast %7 : vector<16xf32> to vector<16x1xf32>
    %9 = vector.extract_strided_slice %5 {offsets = [0, 0], sizes = [4, 1], strides = [1, 1]} : vector<16x1xf32> to vector<4x1xf32>
    %10 = vector.extract_strided_slice %5 {offsets = [4, 0], sizes = [4, 1], strides = [1, 1]} : vector<16x1xf32> to vector<4x1xf32>
    %11 = arith.addf %9, %10 : vector<4x1xf32>
    %12 = vector.extract_strided_slice %5 {offsets = [8, 0], sizes = [4, 1], strides = [1, 1]} : vector<16x1xf32> to vector<4x1xf32>
    %13 = arith.addf %11, %12 : vector<4x1xf32>
    %14 = vector.extract_strided_slice %5 {offsets = [12, 0], sizes = [4, 1], strides = [1, 1]} : vector<16x1xf32> to vector<4x1xf32>
    %15 = arith.addf %13, %14 : vector<4x1xf32>
    %16 = vector.extract_strided_slice %8 {offsets = [0, 0], sizes = [4, 1], strides = [1, 1]} : vector<16x1xf32> to vector<4x1xf32>
    %17 = vector.extract_strided_slice %8 {offsets = [4, 0], sizes = [4, 1], strides = [1, 1]} : vector<16x1xf32> to vector<4x1xf32>
    %18 = arith.addf %16, %17 : vector<4x1xf32>
    %19 = vector.extract_strided_slice %8 {offsets = [8, 0], sizes = [4, 1], strides = [1, 1]} : vector<16x1xf32> to vector<4x1xf32>
    %20 = arith.addf %18, %19 : vector<4x1xf32>
    %21 = vector.extract_strided_slice %8 {offsets = [12, 0], sizes = [4, 1], strides = [1, 1]} : vector<16x1xf32> to vector<4x1xf32>
    %22 = arith.addf %20, %21 : vector<4x1xf32>
    %cst_6 = arith.constant 9.765625E-4 : f32
    %23 = vector.broadcast %cst_6 : f32 to vector<4x1xf32>
    %24 = arith.mulf %15, %23 : vector<4x1xf32>
    %cst_7 = arith.constant 9.765625E-4 : f32
    %25 = vector.broadcast %cst_7 : f32 to vector<4x1xf32>
    %26 = arith.mulf %22, %25 : vector<4x1xf32>
    %27 = arith.mulf %24, %24 : vector<4x1xf32>
    %28 = arith.subf %26, %27 : vector<4x1xf32>
    %cst_8 = arith.constant 0.000000e+00 : f32
    %29 = vector.broadcast %cst_8 : f32 to vector<4x1xf32>
    %30 = arith.maximumf %28, %29 : vector<4x1xf32>
    %cst_9 = arith.constant 9.99999974E-6 : f32
    %31 = vector.broadcast %cst_9 : f32 to vector<4x1xf32>
    %32 = arith.addf %30, %31 : vector<4x1xf32>
    %33 = math.rsqrt %32 : vector<4x1xf32>
    %cst_10 = arith.constant 0.000000e+00 : f32
    %34 = vector.broadcast %cst_10 : f32 to vector<4x1xf32>
    %35 = arith.subf %34, %24 : vector<4x1xf32>
    %36 = arith.mulf %35, %33 : vector<4x1xf32>
    %37 = tpu.concatenate %33, %33, %33, %33 in 0 : vector<4x1xf32>, vector<4x1xf32>, vector<4x1xf32>, vector<4x1xf32> -> vector<16x1xf32>
    %38 = tpu.concatenate %36, %36, %36, %36 in 0 : vector<4x1xf32>, vector<4x1xf32>, vector<4x1xf32>, vector<4x1xf32> -> vector<16x1xf32>
    %39 = vector.broadcast %37 : vector<16x1xf32> to vector<16x256xf32>
    %40 = arith.mulf %3, %39 : vector<16x256xf32>
    %41 = vector.broadcast %38 : vector<16x1xf32> to vector<16x256xf32>
    %42 = arith.addf %40, %41 : vector<16x256xf32>
    %cst_11 = arith.constant 0.000000e+00 : f32
    %43 = vector.broadcast %cst_11 : f32 to vector<16x256xf32>
    %44 = arith.cmpf oge, %42, %43 : vector<16x256xf32>
    %cst_12 = arith.constant 2.000000e-01 : f32
    %45 = vector.broadcast %cst_12 : f32 to vector<16x256xf32>
    %46 = arith.mulf %45, %42 : vector<16x256xf32>
    %47 = arith.select %44, %42, %46 : vector<16x256xi1>, vector<16x256xf32>
    %c0_13 = arith.constant 0 : index
    %c0_14 = arith.constant 0 : index
    %c0_15 = arith.constant 0 : index
    %48 = vector.load %arg3[%c0_13, %c0_14, %c0_15] : memref<1x16x256xf32, #tpu.memory_space<vmem>>, vector<1x16x256xf32>
    %49 = vector.shape_cast %48 : vector<1x16x256xf32> to vector<16x256xf32>
    %50 = vector.shape_cast %47 : vector<16x256xf32> to vector<1x16x256xf32>
    tpu.vector_store %arg3[%c0_13, %c0_14, %c0_15], %50 {strides = array<i32>} : memref<1x16x256xf32, #tpu.memory_space<vmem>>, vector<1x16x256xf32>,
    return
  }
  func.func @transform_0(%arg0: i32) -> (i32, i32, i32) {
    %c0_i32 = arith.constant 0 : i32
    %c0_i32_0 = arith.constant 0 : i32
    %c0_i32_1 = arith.constant 0 : i32
    return %arg0, %c0_i32, %c0_i32_0 : i32, i32, i32
  }
  func.func @transform_1(%arg0: i32) -> (i32, i32) {
    %c0_i32 = arith.constant 0 : i32
    %c0_i32_0 = arith.constant 0 : i32
    %c0_i32_1 = arith.constant 0 : i32
    return %c0_i32, %c0_i32_0 : i32, i32
  }
  func.func @transform_2(%arg0: i32) -> (i32, i32, i32) {
    %c0_i32 = arith.constant 0 : i32
    %c0_i32_0 = arith.constant 0 : i32
    %c0_i32_1 = arith.constant 0 : i32
    return %arg0, %c0_i32, %c0_i32_0 : i32, i32, i32
  }
}

</mosaic_0001>

<llo_original>
// kernel: tpu_custom_call.1
$region0: #{tpu_custom_call.1}
  #allocation0 [shape = 'u32[]', space=smem, size = 0x4, offset = 0x4, fixed_abs, tag = 'smem constant byte address 0x4 - core index']
  #allocation1 [shape = 'u32[144,128]{1,0:T(1,128)}', space=vmem, size = 0x12000, scoped, tag = 'internal scratch']
  %s0 = inlined_call_operand.hbm [shape: bf16[2,8,256], index: 0, kind: input, shape index: {}]
  %s1 = inlined_call_operand.vmem [shape: bf16[16,8], index: 1, kind: input, shape index: {}]
  %s2 = inlined_call_operand.hbm [shape: f32[2,16,256], index: 2, kind: output, shape index: {}]
  %s3 = sld [smem:[#allocation0]]
  $region45: #{tpu_custom_call.1} parent=0
    _
  %s5 = ssub.s32 1, %s3
  %s6 = scalar_select 0, %s5, %s3
  $region1: #{tpu_custom_call.1} parent=0
    #allocation2 [shape = 'u8[8192]{0}', space=vmem, size = 0x2000, scoped, tag = 'input window, operand 0']
    #allocation3 [shape = 's32[2]{0}', space=sflag, size = 0x8, scoped, tag = 'scoped memory for tpu_custom_call.1']
    #allocation4 [shape = 's32[2]{0}', space=sflag, size = 0x8, scoped, tag = 'scoped memory for tpu_custom_call.1']
    #allocation5 [shape = 'u8[32768]{0}', space=vmem, size = 0x8000, scoped, tag = 'output window, operand 0']
    %7 = vsyncpa [#allocation3], 0
    %s8 = scalar_lea.sflag [#allocation3], 1
    %9 = vsyncpa %s8, 0
    %10 = vsyncpa [#allocation4], 0
    %s11 = scalar_lea.sflag [#allocation4], 1
    %12 = vsyncpa %s11, 0
    loop: start=0, step=1, limit=4
    $region2: #{tpu_custom_call.1} parent=1 // loop_pre_header
      _
    $region3: #{tpu_custom_call.1} parent=1 // loop_header
      %s14 = sphi 0, %s18
      %p15 = scmp.ge.s32.totalorder %s14, 4
      %s24 = sphi 0, %s26
      %s27 = sphi 0, %s24
      %s28 = sphi 0, %s27
      %s44 = sphi 0, %s28
      %s48 = sphi 0, %s48
      %s50 = sphi 0, %s48
      %s51 = sphi 0, %s50
      %s65 = sphi 0, %s51
      %s71 = sphi 0, %s73
      %s74 = sphi 0, %s71
      %s75 = sphi 0, %s74
      %s91 = sphi 0, %s75
    $region4: #{tpu_custom_call.1} parent=1 // loop_header_branch
      %17 = sbr.rel (%p15) target = $region8
    $region5: #{tpu_custom_call.1} parent=1 // loop_body
      %s19 = ssub.s32 %s14, 1
      %s20 = ssub.s32 %s14, 2
      %s21 = sadd.s32 %s14, 1
      %s22 = ssub.s32 %s14, %s21
      %p23 = scmp.eq.s32.totalorder %s22, 0
      %s25 = sadd.s32 %s24, 1
      %s26 = scalar_select %p23, %s24, %s25
      %p29 = pneg %p23
      %p30 = scmp.eq.s32.totalorder %s14, 1
      %p31 = por %p29, %p30
      %p32 = scmp.ne.s32.totalorder %s24, %s27
      %p33 = scmp.eq.s32.totalorder %s14, 0
      %p34 = por %p32, %p33
      %p35 = scmp.ne.s32.totalorder %s24, %s27
      %p36 = scmp.eq.s32.totalorder %s19, 1
      %p37 = por %p35, %p36
      %p38 = scmp.ne.s32.totalorder %s27, %s28
      %p39 = scmp.eq.s32.totalorder %s19, 0
      %p40 = por %p38, %p39
      %p41 = scmp.ne.s32.totalorder %s27, %s28
      %p42 = scmp.eq.s32.totalorder %s20, 1
      %p43 = por %p41, %p42
      %p45 = scmp.ne.s32.totalorder %s28, %s44
      %p46 = scmp.eq.s32.totalorder %s20, 0
      %p47 = por %p45, %p46
      %s49 = sadd.s32 %s48, 1
      %p52 = scmp.eq.s32.totalorder %s14, 1
      %p53 = scmp.ne.s32.totalorder %s48, %s50
      %p54 = scmp.eq.s32.totalorder %s14, 0
      %p55 = por %p53, %p54
      %p56 = scmp.ne.s32.totalorder %s48, %s50
      %p57 = scmp.eq.s32.totalorder %s19, 1
      %p58 = por %p56, %p57
      %p59 = scmp.ne.s32.totalorder %s50, %s51
      %p60 = scmp.eq.s32.totalorder %s19, 0
      %p61 = por %p59, %p60
      %p62 = scmp.ne.s32.totalorder %s50, %s51
      %p63 = scmp.eq.s32.totalorder %s20, 1
      %p64 = por %p62, %p63
      %p66 = scmp.ne.s32.totalorder %s51, %s65
      %p67 = scmp.eq.s32.totalorder %s20, 0
      %p68 = por %p66, %p67
      %s69 = ssub.s32 %s14, %s21
      %p70 = scmp.eq.s32.totalorder %s69, 0
      %s72 = sadd.s32 %s71, 1
      %s73 = scalar_select %p70, %s71, %s72
      %p76 = pneg %p70
      %p77 = scmp.eq.s32.totalorder %s14, 1
      %p78 = por %p76, %p77
      %p79 = scmp.ne.s32.totalorder %s71, %s74
      %p80 = scmp.eq.s32.totalorder %s14, 0
      %p81 = por %p79, %p80
      %p82 = scmp.ne.s32.totalorder %s71, %s74
      %p83 = scmp.eq.s32.totalorder %s19, 1
      %p84 = por %p82, %p83
      %p85 = scmp.ne.s32.totalorder %s74, %s75
      %p86 = scmp.eq.s32.totalorder %s19, 0
      %p87 = por %p85, %p86
      %p88 = scmp.ne.s32.totalorder %s74, %s75
      %p89 = scmp.eq.s32.totalorder %s20, 1
      %p90 = por %p88, %p89
      %p92 = scmp.ne.s32.totalorder %s75, %s91
      %p93 = scmp.eq.s32.totalorder %s20, 0
      %p94 = por %p92, %p93
      %p95 = scmp.le.s32.totalorder 1, %s14
      %p96 = scmp.lt.s32.totalorder %s14, 3
      %p97 = pnand %p95, %p96
      %p98 = pneg %p97
      // Predicated region
      $region9: #{tpu_custom_call.1} parent=5 // pred_check
        _
      $region10: #{tpu_custom_call.1} parent=5 // pred_check_branch
        %100 = sbr.rel (%p97) target = $region12
      $region11: #{tpu_custom_call.1} parent=5 // pred_region
        %s101 = ssub.s32 %s14, 1
        // Predicated region
        $region13: #{tpu_custom_call.1} parent=11 // pred_check
          %p102 = pneg %p61
        $region14: #{tpu_custom_call.1} parent=11 // pred_check_branch
          %104 = sbr.rel (%p102) target = $region16
        $region15: #{tpu_custom_call.1} parent=11 // pred_region
          _
        $region16: #{tpu_custom_call.1} parent=11 // pred_fallthru
          _
      $region12: #{tpu_custom_call.1} parent=5 // pred_fallthru
        _
      %p105 = scmp.lt.s32.totalorder %s14, 2
      // Predicated region
      $region17: #{tpu_custom_call.1} parent=5 // pred_check
        %p106 = pneg %p105
      $region18: #{tpu_custom_call.1} parent=5 // pred_check_branch
        %108 = sbr.rel (%p106) target = $region20
      $region19: #{tpu_custom_call.1} parent=5 // pred_region
        // Predicated region
        $region21: #{tpu_custom_call.1} parent=19 // pred_check
          %p109 = pneg %p34
        $region22: #{tpu_custom_call.1} parent=19 // pred_check_branch
          %111 = sbr.rel (%p109) target = $region24
        $region23: #{tpu_custom_call.1} parent=19 // pred_region
          %s112 = sand.u32 %s24, 1
          %s113 = scalar_lea.sflag [#allocation3], %s112
          %s114 = sand.u32 %s24, 1
          %s115 = smul.addr %s114, 8
          %s116 = scalar_lea.vmem [#allocation2], %s115
          %s118 = ssub.s32 128, 128
          %119 = vsyncadd %s113, %s118
          %s120 = smul.addr %s14, 2
          %s121 = smul.addr %s120, 64
          %s122 = scalar_lea.hbm %s0, %s121
          %s124 = sshll.u32 %s116, 4
          %s125 = int_to_ptr.vmem [resolvable:$true] %s124
          %127 = dma.hbm_to_vmem [thread:$0]  %s122, 128, %s125, %s113
        $region24: #{tpu_custom_call.1} parent=19 // pred_fallthru
          _
      $region20: #{tpu_custom_call.1} parent=5 // pred_fallthru
        _
      %p128 = scmp.le.s32.totalorder 1, %s14
      %p129 = scmp.lt.s32.totalorder %s14, 3
      %p130 = pnand %p128, %p129
      %p131 = pneg %p130
      // Predicated region
      $region25: #{tpu_custom_call.1} parent=5 // pred_check
        _
      $region26: #{tpu_custom_call.1} parent=5 // pred_check_branch
        %133 = sbr.rel (%p130) target = $region28
      $region27: #{tpu_custom_call.1} parent=5 // pred_region
        %s134 = ssub.s32 %s14, 1
        %s135 = sand.u32 %s27, 1
        %s136 = scalar_lea.sflag [#allocation3], %s135
        %s137 = sand.u32 %s27, 1
        %s138 = smul.addr %s137, 8
        %s139 = scalar_lea.vmem [#allocation2], %s138
        // Predicated region
        $region29: #{tpu_custom_call.1} parent=27 // pred_check
          %p140 = pneg %p40
        $region30: #{tpu_custom_call.1} parent=27 // pred_check_branch
          %142 = sbr.rel (%p140) target = $region32
        $region31: #{tpu_custom_call.1} parent=27 // pred_region
          %143 = dma.done %s136, 128
        $region32: #{tpu_custom_call.1} parent=27 // pred_fallthru
          _
        %s144 = sand.u32 %s27, 1
        %s145 = scalar_lea.sflag [#allocation3], %s144
        %s146 = sand.u32 %s27, 1
        %s147 = smul.addr %s146, 8
        %s148 = scalar_lea.vmem [#allocation2], %s147
        %p149 = pneg %p40
        %p150 = pneg %p37
        %p151 = pneg %p61
        %p152 = pneg %p58
        %p153 = pneg %p87
        %p154 = pneg %p84
        %s155 = sand.u32 %s74, 1
        %s156 = scalar_lea.sflag [#allocation4], %s155
        %s157 = sand.u32 %s74, 1
        %s158 = smul.addr %s157, 32
        %s159 = scalar_lea.vmem [#allocation5], %s158
        %v161 = vld [vmem:[%s139] sm:$0xff]
        %v162 = vld [vmem:[%s1] sm:$0xf]
        %v163 = vld [vmem:[%s1 + $0x4] sm:$0xf]
        %v166 = vunpack.c.l.b16 %v162
        %v167 = vunpack.c.l.b16 %v163
        %v168 = vpack.c.b16 %v167, %v166
        %v170 = vunpack.c.l.b16 %v161
        %v171 = vunpack.c.h.b16 %v161
        %v172 = vpack.c.b16 %v170, %v170
        %v173 = vpack.c.b16 %v171, %v171
        %vm174 = vcmask 64512
        %v176 = vsel %vm174, %v168, 0
        %vm178 = vcmask 1043456
        %v180 = vsel %vm178, %v172, 0
        %v183 = vsel %vm178, %v173, 0
        %185 = vmatprep.subr.bf16.mxu0 %v183
        %186 = vmatpush1.bf16.msra.mxu0 %v180
        %187 = vmatprep.subr.bf16.mxu0 0
        %188 = vmatpush1.bf16.msra.mxu0 0
        %189 = vmatprep.subr.bf16.mxu0 0
        %190 = vmatpush1.bf16.msra.mxu0 0
        %191 = vmatprep.subr.bf16.mxu0 0
        %192 = vmatpush1.bf16.msra.mxu0 0
        %193 = vmatprep.subr.bf16.mxu0 0
        %194 = vmatpush1.bf16.msra.mxu0 0
        %195 = vmatprep.subr.bf16.mxu0 0
        %196 = vmatpush1.bf16.msra.mxu0 0
        %197 = vmatprep.subr.bf16.mxu0 0
        %198 = vmatpush1.bf16.msra.mxu0 0
        %199 = vmatprep.subr.bf16.mxu0 0
        %200 = vmatpush1.bf16.msra.mxu0 0
        %201 = vmatprep.subr.bf16.mxu0 0
        %202 = vmatpush1.bf16.msra.mxu0 0
        %203 = vmatprep.subr.bf16.mxu0 0
        %204 = vmatpush1.bf16.msra.mxu0 0
        %205 = vmatprep.subr.bf16.mxu0 0
        %206 = vmatpush1.bf16.msra.mxu0 0
        %207 = vmatprep.subr.bf16.mxu0 0
        %208 = vmatpush1.bf16.msra.mxu0 0
        %209 = vmatprep.subr.bf16.mxu0 0
        %210 = vmatpush1.bf16.msra.mxu0 0
        %211 = vmatprep.subr.bf16.mxu0 0
        %212 = vmatpush1.bf16.msra.mxu0 0
        %213 = vmatprep.subr.bf16.mxu0 0
        %214 = vmatpush1.bf16.msra.mxu0 0
        %215 = vmatprep.subr.bf16.mxu0 0
        %216 = vmatpush1.bf16.msra.mxu0 0
        %217 = vmatprep.mubr.bf16.mxu0 0
        %218 = vmatmul.mubr.bf16.gmra.mrb[0].mxu0 %v176
        %v219 = vpop.f32.mrb[0].mxu0
        %v220 = vadd.f32 0.0, %v219
        %v221 = vpop.f32.mrb[0].mxu0
        %v222 = vadd.f32 0.0, %v221
        %v223 = vpop.f32.mrb[0].mxu0
        %v224 = vadd.f32 0.0, %v223
        %v225 = vpop.f32.mrb[0].mxu0
        %v226 = vadd.f32 0.0, %v225
        %227 = vdwg.mxu0
        %v228 = vadd.f32 %v220, %v222
        %229 = vadd.xlane.f32.xlu0 %v228
        %v230 = vpop.xlane.xlu0 %229
        %v231 = vadd.f32 %v224, %v226
        %232 = vadd.xlane.f32.xlu0 %v231
        %v233 = vpop.xlane.xlu0 %232
        %v234 = vmul.f32 %v220, %v220
        %v235 = vmul.f32 %v222, %v222
        %v236 = vmul.f32 %v224, %v224
        %v237 = vmul.f32 %v226, %v226
        %v238 = vadd.f32 %v234, %v235
        %239 = vadd.xlane.f32.xlu0 %v238
        %v240 = vpop.xlane.xlu0 %239
        %v241 = vadd.f32 %v236, %v237
        %242 = vadd.xlane.f32.xlu0 %v241
        %v243 = vpop.xlane.xlu0 %242
        %v245 = vrot.slane %v230, 4
        %v247 = vadd.f32 %v230, %v245
        %v248 = vadd.f32 %v247, %v233
        %v250 = vrot.slane %v233, 4
        %v252 = vadd.f32 %v248, %v250
        %v254 = vrot.slane %v240, 4
        %v256 = vadd.f32 %v240, %v254
        %v257 = vadd.f32 %v256, %v243
        %v259 = vrot.slane %v243, 4
        %v261 = vadd.f32 %v257, %v259
        %v262 = vmul.f32 %v252, 0.0009765625
        %v263 = vmul.f32 %v261, 0.0009765625
        %v264 = vmul.f32 %v262, %v262
        %v265 = vsub.f32 %v263, %v264
        %v266 = vmax.f32 %v265, 0.0
        %v267 = vadd.f32 %v266, 1e-05
        %v268 = vrsqrt.pop %v267
        %v269 = vsub.f32 0.0, %v262
        %v270 = vmul.f32 %v269, %v268
        %v272 = vrot.slane %v268, 4
        %v274 = vsel %vm178, %v268, %v272
        %v276 = vrot.slane %v270, 4
        %v278 = vsel %vm178, %v270, %v276
        %280 = vset.pattern.permute.xlu0 0
        %281 = vperm.xlu0 %280, %v274
        %v282 = vpop.permute.xlu0 %281
        %v284 = vmul.f32 %v220, %v282
        %v285 = vmul.f32 %v222, %v282
        %v286 = vmul.f32 %v224, %v282
        %v287 = vmul.f32 %v226, %v282
        %289 = vset.pattern.permute.xlu0 0
        %290 = vperm.xlu0 %289, %v278
        %v291 = vpop.permute.xlu0 %290
        %v293 = vadd.f32 %v284, %v291
        %v294 = vadd.f32 %v285, %v291
        %v295 = vadd.f32 %v286, %v291
        %v296 = vadd.f32 %v287, %v291
        %vm297 = vcmp.ge.f32.partialorder %v293, 0.0
        %vm298 = vcmp.ge.f32.partialorder %v294, 0.0
        %vm299 = vcmp.ge.f32.partialorder %v295, 0.0
        %vm300 = vcmp.ge.f32.partialorder %v296, 0.0
        %v301 = vmul.f32 %v293, 0.2
        %v302 = vmul.f32 %v294, 0.2
        %v303 = vmul.f32 %v295, 0.2
        %v304 = vmul.f32 %v296, 0.2
        %v305 = vsel %vm297, %v293, %v301
        %v306 = vsel %vm298, %v294, %v302
        %v307 = vsel %vm299, %v295, %v303
        %v308 = vsel %vm300, %v296, %v304
        %309 = vst [vmem:[%s159] sm:$0xff] %v305
        %310 = vst [vmem:[%s159 + $0x8] sm:$0xff] %v306
        %311 = vst [vmem:[%s159 + $0x10] sm:$0xff] %v307
        %312 = vst [vmem:[%s159 + $0x18] sm:$0xff] %v308
        %s313 = sand.u32 %s74, 1
        %s314 = scalar_lea.sflag [#allocation4], %s313
        %s315 = sand.u32 %s74, 1
        %s316 = smul.addr %s315, 32
        %s317 = scalar_lea.vmem [#allocation5], %s316
        // Predicated region
        $region33: #{tpu_custom_call.1} parent=27 // pred_check
          %p318 = pneg %p84
        $region34: #{tpu_custom_call.1} parent=27 // pred_check_branch
          %320 = sbr.rel (%p318) target = $region36
        $region35: #{tpu_custom_call.1} parent=27 // pred_region
          %s322 = ssub.s32 512, 512
          %323 = vsyncadd %s314, %s322
          %s324 = smul.addr %s19, 4
          %s325 = smul.addr %s324, 128
          %s326 = scalar_lea.hbm %s2, %s325
          %s327 = sshll.u32 %s317, 4
          %s328 = int_to_ptr.vmem [resolvable:$true] %s327
          %333 = dma.vmem_to_hbm [thread:$0]  %s328, 512, %s326, %s314, 256, 256, 16
        $region36: #{tpu_custom_call.1} parent=27 // pred_fallthru
          _
      $region28: #{tpu_custom_call.1} parent=5 // pred_fallthru
        _
      %p334 = scmp.le.s32.totalorder 2, %s14
      // Predicated region
      $region37: #{tpu_custom_call.1} parent=5 // pred_check
        %p335 = pneg %p334
      $region38: #{tpu_custom_call.1} parent=5 // pred_check_branch
        %337 = sbr.rel (%p335) target = $region40
      $region39: #{tpu_custom_call.1} parent=5 // pred_region
        %s338 = ssub.s32 %s14, 2
        // Predicated region
        $region41: #{tpu_custom_call.1} parent=39 // pred_check
          %p339 = pneg %p90
        $region42: #{tpu_custom_call.1} parent=39 // pred_check_branch
          %341 = sbr.rel (%p339) target = $region44
        $region43: #{tpu_custom_call.1} parent=39 // pred_region
          %s342 = sand.u32 %s75, 1
          %s343 = scalar_lea.sflag [#allocation4], %s342
          %s344 = sand.u32 %s75, 1
          %s345 = smul.addr %s344, 32
          %s346 = scalar_lea.vmem [#allocation5], %s345
          %347 = dma.done %s343, 512
        $region44: #{tpu_custom_call.1} parent=39 // pred_fallthru
          _
      $region40: #{tpu_custom_call.1} parent=5 // pred_fallthru
        _
    $region6: #{tpu_custom_call.1} parent=1 // loop_footer
      %s18 = sadd.s32 1, %s14
    $region7: #{tpu_custom_call.1} parent=1 // loop_footer_branch
      %13 = sbr.rel target = $region3
    $region8: #{tpu_custom_call.1} parent=1 // loop_exit
      _
    %348 = vsyncpa [#allocation3], 1
    %s349 = scalar_lea.sflag [#allocation3], 1
    %350 = vsyncpa %s349, 1
    %351 = vsyncpa [#allocation4], 1
    %s352 = scalar_lea.sflag [#allocation4], 1
    %353 = vsyncpa %s352, 1

</llo_original>
